<compile_context>
chip_gen: v7x
topology: tpu7x:2x2x1
jax: 0.10.0
libtpu: 0.0.40
codegen_flags: <defaults>
</compile_context>

<pallas_src>
import functools
import math

import jax
import jax.numpy as jnp
from jax.experimental import pallas as pl
from jax.experimental.pallas import tpu as pltpu


def _shentropy_kernel(x_ref, o_ref, *, rows, tile_r, eps, log_eps, need_mask):
    x = x_ref[...].astype(jnp.float32)

    # numerically stable softmax over the last (lane) axis
    x_max = jnp.max(x, axis=-1, keepdims=True)
    shift = x - x_max
    e = jnp.exp(shift)
    s = jnp.sum(e, axis=-1, keepdims=True)
    inv_s = 1.0 / s                       # one divide per row -> negligible; exact
    log_s = jnp.log(s)                    # one log per row

    p = e * inv_s                         # softmax probs
    log_p = shift - log_s                 # exact log-softmax (no per-element log)

    # torch clamp(min=eps) fused into a single select:
    #   p >= eps -> p * log(p) ; p < eps -> eps * log(eps)
    term = jnp.where(p >= eps, p * log_p, eps * log_eps)

    # reduce over lanes first: per-row entropy (tile_r, 1)
    row_ent = -jnp.sum(term, axis=-1, keepdims=True)

    if need_mask:
        # ragged tail tile: mask only the (tile_r, 1) row sums (cheap), keep a
        # select so NaN/Inf from unspecified tail rows cannot leak.
        i = pl.program_id(0)
        row_ids = i * tile_r + jax.lax.broadcasted_iota(jnp.int32, row_ent.shape, 0)
        row_ent = jnp.where(row_ids < rows, row_ent, 0.0)

    # per-tile partial of sum(entropy_row); full-vreg lane-dense store
    partial = jnp.sum(row_ent)
    o_ref[...] = jnp.full(o_ref.shape, partial, dtype=jnp.float32)


def _round_up(v, m):
    return ((v + m - 1) // m) * m


def _round_down(v, m):
    return max(m, (v // m) * m)


def shentropy_pallas(preds, eps=1e-6):
    feat = preds.shape[-1]
    x2 = preds.reshape(-1, feat)          # keep native dtype: cast happens in-kernel
    rows = x2.shape[0]
    if rows == 0:
        return jnp.float32(jnp.nan)       # torch .mean() over an empty tensor is nan

    itemsize = jnp.dtype(x2.dtype).itemsize
    packing = max(1, 4 // itemsize)       # bf16 -> 2, int8 -> 4
    sublane = 8 * packing                 # sublane-packed row multiple

    try:
        vmem_bytes = pltpu.get_tpu_info().vmem_capacity_bytes
    except Exception:
        vmem_bytes = 64 << 20             # conservative fallback (v7x-sized)

    # ~48 MiB on v7x, ~96 MiB on v5e/v6e; working-set budget leaves headroom under it.
    vmem_limit = (3 * vmem_bytes) // 4
    vmem_budget = (2 * vmem_limit) // 3

    bytes_native_row = max(1, feat * itemsize)
    bytes_f32_row = feat * 4
    # 2x double-buffered native-dtype input tile + ~5x f32 temporaries (x, e, p, log_p, term)
    ws_per_row = max(1, 2 * bytes_native_row + 5 * bytes_f32_row)

    max_rows_vmem = max(sublane, vmem_budget // ws_per_row)
    max_rows_buf = max(sublane, (8 << 20) // bytes_native_row)   # <= 8 MiB / input buffer
    tile_r = _round_down(min(max_rows_vmem, max_rows_buf), sublane)

    rows_padded = _round_up(rows, sublane)

    # Prefer >= 4 grid steps (v7x megacore split needs >= 2 per TensorCore), but only
    # while each input buffer stays >= ~2 MiB so per-step overhead remains negligible.
    min_rows_2mb = _round_up(max(1, (2 << 20) // bytes_native_row), sublane)
    quarter_rows = _round_up(pl.cdiv(rows_padded, 4), sublane)
    if quarter_rows >= min_rows_2mb:
        tile_r = min(tile_r, quarter_rows)

    tile_r = min(tile_r, rows_padded)     # never allocate more than needed
    num_tiles = pl.cdiv(rows, tile_r)
    need_mask = (rows % tile_r) != 0      # statically elide the tail mask when exact

    kernel = functools.partial(
        _shentropy_kernel,
        rows=rows,
        tile_r=tile_r,
        eps=float(eps),
        log_eps=float(math.log(eps)),
        need_mask=need_mask,
    )

    # NOTE: if a profile ever shows exposed DMA between grid steps, the input
    # BlockSpec can take pipeline_mode=pl.Buffered(3) (re-check VMEM budget first).
    partials = pl.pallas_call(
        kernel,
        out_shape=jax.ShapeDtypeStruct((num_tiles, 8, 128), jnp.float32),
        grid_spec=pltpu.PrefetchScalarGridSpec(
            num_scalar_prefetch=0,
            grid=(num_tiles,),
            in_specs=[pl.BlockSpec((tile_r, feat), lambda i: (i, 0))],
            out_specs=pl.BlockSpec((1, 8, 128), lambda i: (i, 0, 0)),
        ),
        compiler_params=pltpu.CompilerParams(
            dimension_semantics=("parallel",),   # independent tiles -> megacore on v7x
            vmem_limit_bytes=int(vmem_limit),
        ),
    )(x2)

    total = jnp.sum(partials[:, 0, 0])
    return total / jnp.float32(rows)      # entropy.mean() over all leading dims


def shentropy_reference(preds, eps=1e-6):
    x = preds.astype(jnp.float32)
    p = jax.nn.softmax(x, axis=-1)
    p = jnp.maximum(p, eps)               # clamp(min=eps)
    ent = -jnp.sum(p * jnp.log(p), axis=-1)
    return jnp.mean(ent)


if __name__ == "__main__":
    key = jax.random.PRNGKey(0)
    # (batch=2, seq=8, hidden=32): softmax + entropy over the last (hidden) axis.
    preds = jax.random.normal(key, (2, 8, 32), dtype=jnp.float32)

    loss = shentropy_pallas(preds)
    jax.block_until_ready(loss)

    ref = shentropy_reference(preds)
    assert jnp.allclose(loss, ref, rtol=1e-5, atol=1e-6), (loss, ref)

    print("KERNEL_OK")
</pallas_src>

<mosaic_0001>
module attributes {stable_mosaic.version = 11 : i64} {
  func.func @_shentropy_kernel(%arg0: i32, %arg1: memref<16x32xf32, #tpu.memory_space<vmem>>, %arg2: memref<1x8x128xf32, #tpu.memory_space<vmem>>) attributes {dimension_semantics = [#tpu.dimension_semantics<parallel>], iteration_bounds = array<i64: 1>, scalar_prefetch = 0 : i64, scratch_operands = 0 : i64, tpu.core_type = #tpu.core_type<tc>, window_params = [{transform_indices = @transform_0, window_bounds = array<i64: 16, 32>}, {transform_indices = @transform_1, window_bounds = array<i64: 1, 8, 128>}]} {
    %c0 = arith.constant 0 : index
    %c0_0 = arith.constant 0 : index
    %0 = vector.load %arg1[%c0, %c0_0] : memref<16x32xf32, #tpu.memory_space<vmem>>, vector<16x32xf32>
    %cst = arith.constant dense<0xFF800000> : vector<16xf32>
    %1 = vector.multi_reduction <maximumf>, %0, %cst [1] : vector<16x32xf32> to vector<16xf32>
    %2 = vector.shape_cast %1 : vector<16xf32> to vector<16x1xf32>
    %3 = vector.broadcast %2 : vector<16x1xf32> to vector<16x32xf32>
    %4 = arith.subf %0, %3 : vector<16x32xf32>
    %5 = math.exp %4 : vector<16x32xf32>
    %cst_1 = arith.constant dense<0.000000e+00> : vector<16xf32>
    %6 = vector.multi_reduction <add>, %5, %cst_1 [1] : vector<16x32xf32> to vector<16xf32>
    %7 = vector.shape_cast %6 : vector<16xf32> to vector<16x1xf32>
    %cst_2 = arith.constant 1.000000e+00 : f32
    %8 = vector.broadcast %cst_2 : f32 to vector<16x1xf32>
    %9 = arith.divf %8, %7 : vector<16x1xf32>
    %10 = math.log %7 : vector<16x1xf32>
    %11 = vector.broadcast %9 : vector<16x1xf32> to vector<16x32xf32>
    %12 = arith.mulf %5, %11 : vector<16x32xf32>
    %13 = vector.broadcast %10 : vector<16x1xf32> to vector<16x32xf32>
    %14 = arith.subf %4, %13 : vector<16x32xf32>
    %cst_3 = arith.constant 9.99999997E-7 : f32
    %15 = vector.broadcast %cst_3 : f32 to vector<16x32xf32>
    %16 = arith.cmpf oge, %12, %15 : vector<16x32xf32>
    %17 = arith.mulf %12, %14 : vector<16x32xf32>
    %cst_4 = arith.constant -1.3815511E-5 : f32
    %18 = vector.broadcast %cst_4 : f32 to vector<16x32xf32>
    %19 = arith.select %16, %17, %18 : vector<16x32xi1>, vector<16x32xf32>
    %cst_5 = arith.constant dense<0.000000e+00> : vector<16xf32>
    %20 = vector.multi_reduction <add>, %19, %cst_5 [1] : vector<16x32xf32> to vector<16xf32>
    %21 = vector.shape_cast %20 : vector<16xf32> to vector<16x1xf32>
    %cst_6 = arith.constant 0.000000e+00 : f32
    %22 = vector.broadcast %cst_6 : f32 to vector<16x1xf32>
    %23 = arith.subf %22, %21 : vector<16x1xf32>
    %24 = vector.shape_cast %23 : vector<16x1xf32> to vector<1x16x1xf32>
    %cst_7 = arith.constant dense<0.000000e+00> : vector<1xf32>
    %25 = vector.multi_reduction <add>, %24, %cst_7 [1, 2] : vector<1x16x1xf32> to vector<1xf32>
    %26 = vector.shape_cast %25 : vector<1xf32> to vector<1x1x1xf32>
    %27 = vector.extract %26[0, 0, 0] : f32 from vector<1x1x1xf32>
    %28 = vector.broadcast %27 : f32 to vector<1x8x128xf32>
    %c0_8 = arith.constant 0 : index
    %c0_9 = arith.constant 0 : index
    %c0_10 = arith.constant 0 : index
    %29 = vector.load %arg2[%c0_8, %c0_9, %c0_10] : memref<1x8x128xf32, #tpu.memory_space<vmem>>, vector<1x8x128xf32>
    tpu.vector_store %arg2[%c0_8, %c0_9, %c0_10], %28 {strides = array<i32>} : memref<1x8x128xf32, #tpu.memory_space<vmem>>, vector<1x8x128xf32>,
    return
  }
  func.func @transform_0(%arg0: i32) -> (i32, i32) {
    %c0_i32 = arith.constant 0 : i32
    %c0_i32_0 = arith.constant 0 : i32
    return %arg0, %c0_i32 : i32, i32
  }
  func.func @transform_1(%arg0: i32) -> (i32, i32, i32) {
    %c0_i32 = arith.constant 0 : i32
    %c0_i32_0 = arith.constant 0 : i32
    %c0_i32_1 = arith.constant 0 : i32
    return %arg0, %c0_i32, %c0_i32_0 : i32, i32, i32
  }
}

</mosaic_0001>

<llo_original>
// kernel: tpu_custom_call.1
$region0: #{tpu_custom_call.1}
  #allocation0 [shape = 'u32[]', space=smem, size = 0x4, offset = 0x4, fixed_abs, tag = 'smem constant byte address 0x4 - core index']
  #allocation1 [shape = 'u32[144,128]{1,0:T(1,128)}', space=vmem, size = 0x12000, scoped, tag = 'internal scratch']
  %s0 = inlined_call_operand.hbm [shape: f32[16,32], index: 0, kind: input, shape index: {}]
  %s1 = inlined_call_operand.hbm [shape: f32[1,8,128], index: 1, kind: output, shape index: {}]
  %s2 = sld [smem:[#allocation0]]
  $region18: #{tpu_custom_call.1} parent=0
    _
  %s4 = ssub.s32 1, %s2
  %s5 = scalar_select 0, %s4, %s2
  $region1: #{tpu_custom_call.1} parent=0
    #allocation2 [shape = 'u8[8192]{0}', space=vmem, size = 0x2000, scoped, tag = 'input window, operand 0, single buffered']
    #allocation3 [shape = 's32[1]{0}', space=sflag, size = 0x4, scoped, tag = 'scoped memory for tpu_custom_call.1']
    #allocation4 [shape = 's32[1]{0}', space=sflag, size = 0x4, scoped, tag = 'scoped memory for tpu_custom_call.1']
    #allocation5 [shape = 'u8[4096]{0}', space=vmem, size = 0x1000, scoped, tag = 'output window, operand 0, single buffered']
    %6 = vsyncpa [#allocation3], 0
    %7 = vsyncpa [#allocation4], 0
    // Predicated region
    $region2: #{tpu_custom_call.1} parent=1 // pred_check
      _
    $region3: #{tpu_custom_call.1} parent=1 // pred_check_branch
      %9 = sbr.rel (0) target = $region5
    $region4: #{tpu_custom_call.1} parent=1 // pred_region
      %s11 = ssub.s32 256, 256
      %12 = vsyncadd [#allocation3], %s11
      %s13 = sshll.u32 [#allocation2], 4
      %s14 = int_to_ptr.vmem [resolvable:$true] %s13
      %19 = dma.hbm_to_vmem [thread:$0]  %s0, 256, %s14, [#allocation3], 128, 128, 8
    $region5: #{tpu_custom_call.1} parent=1 // pred_fallthru
      _
    // Predicated region
    $region6: #{tpu_custom_call.1} parent=1 // pred_check
      _
    $region7: #{tpu_custom_call.1} parent=1 // pred_check_branch
      %21 = sbr.rel (0) target = $region9
    $region8: #{tpu_custom_call.1} parent=1 // pred_region
      %22 = dma.done [#allocation3], 256
    $region9: #{tpu_custom_call.1} parent=1 // pred_fallthru
      _
    %v23 = vld [vmem:[#allocation2] sm:$0xff]
    %v24 = vld [vmem:[#allocation2 + $0x8] sm:$0xff]
    %vm25 = vcmask 261120
    %v26 = vsel %vm25, %v23, -inf
    %27 = vmax.xlane.f32.xlu0 %v26
    %v28 = vpop.xlane.xlu0 %27
    %v29 = vsel %vm25, %v24, -inf
    %30 = vmax.xlane.f32.xlu0 %v29
    %v31 = vpop.xlane.xlu0 %30
    %v32 = vsub.f32 %v23, %v28
    %v33 = vsub.f32 %v24, %v31
    %v34 = vmul.f32 %v32, 1.442695
    %v35 = vpow.pop %v34
    %v36 = vmul.f32 %v33, 1.442695
    %v37 = vpow.pop %v36
    %v38 = vsel %vm25, %v35, 0.0
    %39 = vadd.xlane.f32.xlu0 %v38
    %v40 = vpop.xlane.xlu0 %39
    %v41 = vsel %vm25, %v37, 0.0
    %42 = vadd.xlane.f32.xlu0 %v41
    %v43 = vpop.xlane.xlu0 %42
    %v44 = vrcp.pop %v40
    %v45 = vmul.f32 1.0, %v44
    %v46 = vrcp.pop %v43
    %v47 = vmul.f32 1.0, %v46
    %v48 = vlog2.pop %v40
    %v49 = vmul.f32 %v48, 0.6931472
    %v50 = vlog2.pop %v43
    %v51 = vmul.f32 %v50, 0.6931472
    %v52 = vmul.f32 %v35, %v45
    %v53 = vmul.f32 %v37, %v47
    %v54 = vsub.f32 %v32, %v49
    %v55 = vsub.f32 %v33, %v51
    %vm56 = vcmp.ge.f32.partialorder %v52, 1e-06
    %vm57 = vcmp.ge.f32.partialorder %v53, 1e-06
    %v58 = vmul.f32 %v52, %v54
    %v59 = vmul.f32 %v53, %v55
    %v60 = vsel %vm56, %v58, -1.3815511e-05
    %v61 = vsel %vm57, %v59, -1.3815511e-05
    %v62 = vsel %vm25, %v60, 0.0
    %63 = vadd.xlane.f32.xlu0 %v62
    %v64 = vpop.xlane.xlu0 %63
    %v65 = vsel %vm25, %v61, 0.0
    %66 = vadd.xlane.f32.xlu0 %v65
    %v67 = vpop.xlane.xlu0 %66
    %v68 = vsub.f32 0.0, %v64
    %v69 = vsub.f32 0.0, %v67
    %vm70 = vcmask 7168
    %v71 = vsel %vm70, %v68, 0.0
    %v72 = vsel %vm70, %v69, 0.0
    %v73 = vadd.f32 %v71, %v72
    %74 = vadd.xlane.f32.xlu0 %v73
    %v75 = vpop.xlane.xlu0 %74
    %v76 = vrot.slane %v75, 4
    %v77 = vadd.f32 %v75, %v76
    %v78 = vrot.slane %v77, 2
    %v79 = vadd.f32 %v77, %v78
    %v80 = vrot.slane %v79, 1
    %v81 = vadd.f32 %v79, %v80
    %s82 = vtos %v81
    %v83 = vstv %s82
    %84 = vst [vmem:[#allocation5] sm:$0xff] %v83
    // Predicated region
    $region10: #{tpu_custom_call.1} parent=1 // pred_check
      _
    $region11: #{tpu_custom_call.1} parent=1 // pred_check_branch
      %86 = sbr.rel (0) target = $region13
    $region12: #{tpu_custom_call.1} parent=1 // pred_region
      %s88 = ssub.s32 128, 128
      %89 = vsyncadd [#allocation4], %s88
      %s91 = sshll.u32 [#allocation5], 4
      %s92 = int_to_ptr.vmem [resolvable:$true] %s91
      %94 = dma.vmem_to_hbm [thread:$0]  %s92, 128, %s1, [#allocation4]
    $region13: #{tpu_custom_call.1} parent=1 // pred_fallthru
      _
    // Predicated region
    $region14: #{tpu_custom_call.1} parent=1 // pred_check
      _
    $region15: #{tpu_custom_call.1} parent=1 // pred_check_branch
      %96 = sbr.rel (0) target = $region17
    $region16: #{tpu_custom_call.1} parent=1 // pred_region
      %97 = dma.done [#allocation4], 128
    $region17: #{tpu_custom_call.1} parent=1 // pred_fallthru
      _
    %98 = vsyncpa [#allocation3], 1
    %99 = vsyncpa [#allocation4], 1

</llo_original>
